<compile_context>
chip_gen: v6e
topology: v6e:2x2x1
jax: 0.10.0
libtpu: 0.0.40
codegen_flags: <defaults>
</compile_context>

<pallas_src>
import functools

import jax
import jax.numpy as jnp
from jax.experimental import pallas as pl
from jax.experimental.pallas import tpu as pltpu


def _focal_loss_kernel(tgt_ref, x1_ref, x2_ref, loss_ref, *, gamma):
    """Per-row DIMP focal loss (version=2, alpha=None) for one row block."""
    tgt = tgt_ref[...]                                       # (TN, 1) int32

    def gathered_log_softmax(x_ref):
        # Returns log_softmax(x)[row, tgt[row]] as a (TN, 1) column without
        # materializing the full log_softmax output:
        #   logpt = x[tgt] - rowmax - log(sum(exp(x - rowmax)))
        x = x_ref[...].astype(jnp.float32)                   # (TN, C)
        col = jax.lax.broadcasted_iota(jnp.int32, x.shape, dimension=1)
        # where(...) instead of one-hot multiply: no -inf*0 -> NaN hazard and
        # no int->f32 convert / extra (TN, C) multiply.
        tgt_val = jnp.sum(jnp.where(col == tgt, x, 0.0),
                          axis=-1, keepdims=True)            # (TN, 1)
        m = jnp.max(x, axis=-1, keepdims=True)               # (TN, 1)
        lse = jnp.log(jnp.sum(jnp.exp(x - m), axis=-1, keepdims=True))
        return tgt_val - m - lse                             # (TN, 1)

    # Process input1 fully before input2 so their (TN, C) f32 intermediates
    # are not live at the same time (halves peak VMEM/vreg pressure).
    logpt = gathered_log_softmax(x1_ref)
    logpt2 = gathered_log_softmax(x2_ref)

    # (pt2 / pt) ** gamma == exp(gamma * (logpt2 - logpt)):
    # one EUP exp instead of two exps + a reciprocal + a generic pow.
    delta = logpt2 - logpt
    if gamma == 1.0:
        pg = jnp.exp(delta)
    else:
        pg = jnp.exp(jnp.float32(gamma) * delta)

    # TODO(synk): alpha class-weight gather and versions 1/3/4 are not wired
    # in (module defaults: alpha=None, version=2).
    # TODO(synk): small-C lane packing (C <= 64) and an online-LSE second grid
    # axis over C chunks for vocab-scale C are not implemented here.
    loss_ref[...] = -pg * logpt                              # (TN, 1)


_MAX_BLOCK_ROWS = 4096


def _vmem_config():
    """Per-generation VMEM limit / tile budget (v5e/v6e: 128 MiB, v7x: 64 MiB)."""
    try:
        cap = int(pltpu.get_tpu_info().vmem_capacity_bytes)
    except Exception:  # e.g. interpret mode / unknown chip
        cap = 64 * 1024 * 1024
    vmem_limit = min((cap * 3) // 4, 100 * 1024 * 1024)   # 96 MiB v5e/v6e, 48 MiB v7x
    tile_budget = vmem_limit // 2                          # 48 MiB / 24 MiB
    return tile_budget, vmem_limit


def _pick_block_rows(n, c, itemsize, tile_budget):
    """Largest row tile whose pipelined tiles + f32 intermediates fit the budget."""
    c_lanes = -(-c // 128) * 128                 # VMEM pads the lane dim to 128
    per_row = (2 * 2 * c_lanes * itemsize        # 2 inputs x 2 pipeline buffers
               + 4 * c_lanes * 4                 # live f32 (TN, C) intermediates
               + 4 * 128)                        # target + output columns (padded)
    rows = tile_budget // per_row
    rows = int(min(rows, _MAX_BLOCK_ROWS, -(-n // 8) * 8))
    rows = max(8, (rows // 8) * 8)               # sublane multiple
    return rows


def focal_loss(logits1, logits2, target, *, gamma=1.0, size_average=True,
               block_rows=None):
    """logits1/logits2: (N, C) float (f32 or bf16); target: (N,) int.

    Returns the scalar DIMP focal loss (version=2, alpha=None).
    """
    n, c = logits1.shape
    tile_budget, vmem_limit = _vmem_config()
    if block_rows is None:
        block_rows = _pick_block_rows(
            n, c, jnp.dtype(logits1.dtype).itemsize, tile_budget)
    assert block_rows % 8 == 0, "block_rows must be a multiple of 8"

    tgt2d = target.astype(jnp.int32).reshape(n, 1)
    kernel = functools.partial(_focal_loss_kernel, gamma=float(gamma))

    # No padding of the logits: cdiv grid, Pallas clips the boundary block.
    # Out-of-range rows of the last block compute garbage but their writes are
    # dropped, so they never reach the reduction below.
    per_row_loss = pl.pallas_call(
        kernel,
        out_shape=jax.ShapeDtypeStruct((n, 1), jnp.float32),
        grid_spec=pltpu.PrefetchScalarGridSpec(
            num_scalar_prefetch=0,
            grid=(pl.cdiv(n, block_rows),),
            in_specs=[
                pl.BlockSpec((block_rows, 1), lambda i: (i, 0)),
                pl.BlockSpec((block_rows, c), lambda i: (i, 0)),
                pl.BlockSpec((block_rows, c), lambda i: (i, 0)),
            ],
            out_specs=pl.BlockSpec((block_rows, 1), lambda i: (i, 0)),
        ),
        compiler_params=pltpu.CompilerParams(
            dimension_semantics=("parallel",),   # per-block outputs -> no
            vmem_limit_bytes=vmem_limit),        # shared accumulator race
    )(tgt2d, logits1, logits2)

    loss = per_row_loss[:, 0]
    return loss.mean() if size_average else loss.sum()


def focal_loss_ref(logits1, logits2, target, gamma=1.0, size_average=True):
    ls1 = jax.nn.log_softmax(logits1.astype(jnp.float32), axis=-1)
    ls2 = jax.nn.log_softmax(logits2.astype(jnp.float32), axis=-1)
    idx = jnp.arange(logits1.shape[0])
    logpt = ls1[idx, target]
    logpt2 = ls2[idx, target]
    pt, pt2 = jnp.exp(logpt), jnp.exp(logpt2)
    loss = -((pt2 / pt) ** gamma) * logpt
    return loss.mean() if size_average else loss.sum()


if __name__ == "__main__":
    key = jax.random.PRNGKey(0)
    k1, k2, k3 = jax.random.split(key, 3)

    N, C = 48, 32          # 48 samples, 32 classes
    logits1 = jax.random.normal(k1, (N, C), dtype=jnp.float32)
    logits2 = jax.random.normal(k2, (N, C), dtype=jnp.float32)
    target = jax.random.randint(k3, (N,), 0, C, dtype=jnp.int32)

    # 1) Default (auto-sized) row tile, mean reduction, gamma=1 fast path.
    out = focal_loss(logits1, logits2, target, gamma=1.0, size_average=True)
    out = jax.block_until_ready(out)
    ref = focal_loss_ref(logits1, logits2, target, gamma=1.0, size_average=True)
    assert jnp.allclose(out, ref, atol=1e-5, rtol=1e-5), (out, ref)

    # 2) Explicit small tile: exercises a multi-step grid with a clipped
    #    boundary block (N=48, block_rows=32 -> last block has 16 live rows),
    #    i.e. the no-padding path.
    out2 = focal_loss(logits1, logits2, target, gamma=1.0, size_average=True,
                      block_rows=32)
    out2 = jax.block_until_ready(out2)
    assert jnp.allclose(out2, ref, atol=1e-5, rtol=1e-5), (out2, ref)

    # 3) gamma != 1 path and sum reduction.
    out3 = focal_loss(logits1, logits2, target, gamma=2.0, size_average=False)
    out3 = jax.block_until_ready(out3)
    ref3 = focal_loss_ref(logits1, logits2, target, gamma=2.0,
                          size_average=False)
    assert jnp.allclose(out3, ref3, atol=1e-4, rtol=1e-5), (out3, ref3)

    # 4) Masked-logit robustness: -inf in non-target classes must not NaN.
    masked1 = logits1.at[:, 0].set(-jnp.inf)
    masked2 = logits2.at[:, 0].set(-jnp.inf)
    tgt_nz = jnp.maximum(target, 1)   # never gather the masked class
    out4 = focal_loss(masked1, masked2, tgt_nz, gamma=1.0, size_average=True)
    out4 = jax.block_until_ready(out4)
    ref4 = focal_loss_ref(masked1, masked2, tgt_nz, gamma=1.0,
                          size_average=True)
    assert jnp.isfinite(out4), out4
    assert jnp.allclose(out4, ref4, atol=1e-5, rtol=1e-5), (out4, ref4)

    print("KERNEL_OK")
</pallas_src>

<mosaic_0001>
module attributes {stable_mosaic.version = 11 : i64} {
  func.func @_focal_loss_kernel(%arg0: i32, %arg1: memref<48x1xi32, #tpu.memory_space<vmem>>, %arg2: memref<48x32xf32, #tpu.memory_space<vmem>>, %arg3: memref<48x32xf32, #tpu.memory_space<vmem>>, %arg4: memref<48x1xf32, #tpu.memory_space<vmem>>) attributes {dimension_semantics = [#tpu.dimension_semantics<parallel>], iteration_bounds = array<i64: 1>, scalar_prefetch = 0 : i64, scratch_operands = 0 : i64, tpu.core_type = #tpu.core_type<tc>, window_params = [{transform_indices = @transform_0, window_bounds = array<i64: 48, 1>}, {transform_indices = @transform_1, window_bounds = array<i64: 48, 32>}, {transform_indices = @transform_2, window_bounds = array<i64: 48, 32>}, {transform_indices = @transform_3, window_bounds = array<i64: 48, 1>}]} {
    %c0 = arith.constant 0 : index
    %c0_0 = arith.constant 0 : index
    %0 = vector.load %arg1[%c0, %c0_0] : memref<48x1xi32, #tpu.memory_space<vmem>>, vector<48x1xi32>
    %c0_1 = arith.constant 0 : index
    %c0_2 = arith.constant 0 : index
    %1 = vector.load %arg2[%c0_1, %c0_2] : memref<48x32xf32, #tpu.memory_space<vmem>>, vector<48x32xf32>
    %2 = tpu.iota {dimensions = array<i32: 1>} : vector<48x32xi32>
    %3 = vector.broadcast %0 : vector<48x1xi32> to vector<48x32xi32>
    %4 = arith.cmpi eq, %2, %3 : vector<48x32xi32>
    %cst = arith.constant 0.000000e+00 : f32
    %5 = vector.broadcast %cst : f32 to vector<48x32xf32>
    %6 = arith.select %4, %1, %5 : vector<48x32xi1>, vector<48x32xf32>
    %cst_3 = arith.constant dense<0.000000e+00> : vector<48xf32>
    %7 = vector.multi_reduction <add>, %6, %cst_3 [1] : vector<48x32xf32> to vector<48xf32>
    %8 = vector.shape_cast %7 : vector<48xf32> to vector<48x1xf32>
    %cst_4 = arith.constant dense<0xFF800000> : vector<48xf32>
    %9 = vector.multi_reduction <maximumf>, %1, %cst_4 [1] : vector<48x32xf32> to vector<48xf32>
    %10 = vector.shape_cast %9 : vector<48xf32> to vector<48x1xf32>
    %11 = vector.broadcast %10 : vector<48x1xf32> to vector<48x32xf32>
    %12 = arith.subf %1, %11 : vector<48x32xf32>
    %13 = math.exp %12 : vector<48x32xf32>
    %cst_5 = arith.constant dense<0.000000e+00> : vector<48xf32>
    %14 = vector.multi_reduction <add>, %13, %cst_5 [1] : vector<48x32xf32> to vector<48xf32>
    %15 = vector.shape_cast %14 : vector<48xf32> to vector<48x1xf32>
    %16 = math.log %15 : vector<48x1xf32>
    %17 = arith.subf %8, %10 : vector<48x1xf32>
    %18 = arith.subf %17, %16 : vector<48x1xf32>
    %c0_6 = arith.constant 0 : index
    %c0_7 = arith.constant 0 : index
    %19 = vector.load %arg3[%c0_6, %c0_7] : memref<48x32xf32, #tpu.memory_space<vmem>>, vector<48x32xf32>
    %20 = tpu.iota {dimensions = array<i32: 1>} : vector<48x32xi32>
    %21 = vector.broadcast %0 : vector<48x1xi32> to vector<48x32xi32>
    %22 = arith.cmpi eq, %20, %21 : vector<48x32xi32>
    %cst_8 = arith.constant 0.000000e+00 : f32
    %23 = vector.broadcast %cst_8 : f32 to vector<48x32xf32>
    %24 = arith.select %22, %19, %23 : vector<48x32xi1>, vector<48x32xf32>
    %cst_9 = arith.constant dense<0.000000e+00> : vector<48xf32>
    %25 = vector.multi_reduction <add>, %24, %cst_9 [1] : vector<48x32xf32> to vector<48xf32>
    %26 = vector.shape_cast %25 : vector<48xf32> to vector<48x1xf32>
    %cst_10 = arith.constant dense<0xFF800000> : vector<48xf32>
    %27 = vector.multi_reduction <maximumf>, %19, %cst_10 [1] : vector<48x32xf32> to vector<48xf32>
    %28 = vector.shape_cast %27 : vector<48xf32> to vector<48x1xf32>
    %29 = vector.broadcast %28 : vector<48x1xf32> to vector<48x32xf32>
    %30 = arith.subf %19, %29 : vector<48x32xf32>
    %31 = math.exp %30 : vector<48x32xf32>
    %cst_11 = arith.constant dense<0.000000e+00> : vector<48xf32>
    %32 = vector.multi_reduction <add>, %31, %cst_11 [1] : vector<48x32xf32> to vector<48xf32>
    %33 = vector.shape_cast %32 : vector<48xf32> to vector<48x1xf32>
    %34 = math.log %33 : vector<48x1xf32>
    %35 = arith.subf %26, %28 : vector<48x1xf32>
    %36 = arith.subf %35, %34 : vector<48x1xf32>
    %37 = arith.subf %36, %18 : vector<48x1xf32>
    %38 = math.exp %37 : vector<48x1xf32>
    %cst_12 = arith.constant 0.000000e+00 : f32
    %39 = vector.broadcast %cst_12 : f32 to vector<48x1xf32>
    %40 = arith.subf %39, %38 : vector<48x1xf32>
    %41 = arith.mulf %40, %18 : vector<48x1xf32>
    %c0_13 = arith.constant 0 : index
    %c0_14 = arith.constant 0 : index
    %42 = vector.load %arg4[%c0_13, %c0_14] : memref<48x1xf32, #tpu.memory_space<vmem>>, vector<48x1xf32>
    tpu.vector_store %arg4[%c0_13, %c0_14], %41 {strides = array<i32>} : memref<48x1xf32, #tpu.memory_space<vmem>>, vector<48x1xf32>,
    return
  }
  func.func @transform_0(%arg0: i32) -> (i32, i32) {
    %c0_i32 = arith.constant 0 : i32
    %c0_i32_0 = arith.constant 0 : i32
    return %arg0, %c0_i32 : i32, i32
  }
  func.func @transform_1(%arg0: i32) -> (i32, i32) {
    %c0_i32 = arith.constant 0 : i32
    %c0_i32_0 = arith.constant 0 : i32
    return %arg0, %c0_i32 : i32, i32
  }
  func.func @transform_2(%arg0: i32) -> (i32, i32) {
    %c0_i32 = arith.constant 0 : i32
    %c0_i32_0 = arith.constant 0 : i32
    return %arg0, %c0_i32 : i32, i32
  }
  func.func @transform_3(%arg0: i32) -> (i32, i32) {
    %c0_i32 = arith.constant 0 : i32
    %c0_i32_0 = arith.constant 0 : i32
    return %arg0, %c0_i32 : i32, i32
  }
}

</mosaic_0001>

<llo_original>
// kernel: tpu_custom_call.1
$region0: #{tpu_custom_call.1}
  #allocation0 [shape = 'u32[]', space=smem, size = 0x4, offset = 0x4, fixed_abs, tag = 'smem constant byte address 0x4 - core index']
  #allocation1 [shape = 'u32[144,128]{1,0:T(1,128)}', space=vmem, size = 0x12000, scoped, tag = 'internal scratch']
  %s0 = inlined_call_operand.vmem [shape: s32[48,1], index: 0, kind: input, shape index: {}]
  %s1 = inlined_call_operand.vmem [shape: f32[48,32], index: 1, kind: input, shape index: {}]
  %s2 = inlined_call_operand.vmem [shape: f32[48,32], index: 2, kind: input, shape index: {}]
  %s3 = inlined_call_operand.vmem [shape: f32[48,1], index: 3, kind: output, shape index: {}]
  %s4 = sld [smem:[#allocation0]]
  $region22: #{tpu_custom_call.1} parent=0
    _
  %s6 = ssub.s32 1, %s4
  %s7 = scalar_select 0, %s6, %s4
  // Predicated region
  $region2: #{tpu_custom_call.1} parent=0 // pred_check
    _
  $region3: #{tpu_custom_call.1} parent=0 // pred_check_branch
    %9 = sbr.rel (0) target = $region5
  $region4: #{tpu_custom_call.1} parent=0 // pred_region
    _
  $region5: #{tpu_custom_call.1} parent=0 // pred_fallthru
    _
  // Predicated region
  $region6: #{tpu_custom_call.1} parent=0 // pred_check
    _
  $region7: #{tpu_custom_call.1} parent=0 // pred_check_branch
    %11 = sbr.rel (0) target = $region9
  $region8: #{tpu_custom_call.1} parent=0 // pred_region
    _
  $region9: #{tpu_custom_call.1} parent=0 // pred_fallthru
    _
  // Predicated region
  $region10: #{tpu_custom_call.1} parent=0 // pred_check
    _
  $region11: #{tpu_custom_call.1} parent=0 // pred_check_branch
    %13 = sbr.rel (0) target = $region13
  $region12: #{tpu_custom_call.1} parent=0 // pred_region
    _
  $region13: #{tpu_custom_call.1} parent=0 // pred_fallthru
    _
  %v14 = vld [vmem:[%s0] sm:$0xff]
  %v15 = vld [vmem:[%s0 + $0x8] sm:$0xff]
  %v16 = vld [vmem:[%s0 + $0x10] sm:$0xff]
  %v17 = vld [vmem:[%s0 + $0x18] sm:$0xff]
  %v18 = vld [vmem:[%s0 + $0x20] sm:$0xff]
  %v19 = vld [vmem:[%s0 + $0x28] sm:$0xff]
  %v20 = vld [vmem:[%s1] sm:$0xff]
  %v21 = vld [vmem:[%s1 + $0x8] sm:$0xff]
  %v22 = vld [vmem:[%s1 + $0x10] sm:$0xff]
  %v23 = vld [vmem:[%s1 + $0x18] sm:$0xff]
  %v24 = vld [vmem:[%s1 + $0x20] sm:$0xff]
  %v25 = vld [vmem:[%s1 + $0x28] sm:$0xff]
  %v26 = vlaneseq
  %v27 = vand.u32 %v26, 127
  %28 = vset.pattern.permute.xlu0 0
  %29 = vperm.xlu0 %28, %v14
  %v30 = vpop.permute.xlu0 %29
  %31 = vset.pattern.permute.xlu0 0
  %32 = vperm.xlu0 %31, %v15
  %v33 = vpop.permute.xlu0 %32
  %34 = vset.pattern.permute.xlu0 0
  %35 = vperm.xlu0 %34, %v16
  %v36 = vpop.permute.xlu0 %35
  %37 = vset.pattern.permute.xlu0 0
  %38 = vperm.xlu0 %37, %v17
  %v39 = vpop.permute.xlu0 %38
  %40 = vset.pattern.permute.xlu0 0
  %41 = vperm.xlu0 %40, %v18
  %v42 = vpop.permute.xlu0 %41
  %43 = vset.pattern.permute.xlu0 0
  %44 = vperm.xlu0 %43, %v19
  %v45 = vpop.permute.xlu0 %44
  %vm46 = vcmp.eq.s32.totalorder %v27, %v30
  %vm47 = vcmp.eq.s32.totalorder %v27, %v33
  %vm48 = vcmp.eq.s32.totalorder %v27, %v36
  %vm49 = vcmp.eq.s32.totalorder %v27, %v39
  %vm50 = vcmp.eq.s32.totalorder %v27, %v42
  %vm51 = vcmp.eq.s32.totalorder %v27, %v45
  %v52 = vsel %vm46, %v20, 0.0
  %v53 = vsel %vm47, %v21, 0.0
  %v54 = vsel %vm48, %v22, 0.0
  %v55 = vsel %vm49, %v23, 0.0
  %v56 = vsel %vm50, %v24, 0.0
  %v57 = vsel %vm51, %v25, 0.0
  %vm58 = vcmask 261120
  %v59 = vsel %vm58, %v52, 0.0
  %60 = vadd.xlane.f32.xlu0 %v59
  %v61 = vpop.xlane.xlu0 %60
  %v62 = vsel %vm58, %v53, 0.0
  %63 = vadd.xlane.f32.xlu0 %v62
  %v64 = vpop.xlane.xlu0 %63
  %v65 = vsel %vm58, %v54, 0.0
  %66 = vadd.xlane.f32.xlu0 %v65
  %v67 = vpop.xlane.xlu0 %66
  %v68 = vsel %vm58, %v55, 0.0
  %69 = vadd.xlane.f32.xlu0 %v68
  %v70 = vpop.xlane.xlu0 %69
  %v71 = vsel %vm58, %v56, 0.0
  %72 = vadd.xlane.f32.xlu0 %v71
  %v73 = vpop.xlane.xlu0 %72
  %v74 = vsel %vm58, %v57, 0.0
  %75 = vadd.xlane.f32.xlu0 %v74
  %v76 = vpop.xlane.xlu0 %75
  %v77 = vsel %vm58, %v20, -inf
  %78 = vmax.xlane.f32.xlu0 %v77
  %v79 = vpop.xlane.xlu0 %78
  %v80 = vsel %vm58, %v21, -inf
  %81 = vmax.xlane.f32.xlu0 %v80
  %v82 = vpop.xlane.xlu0 %81
  %v83 = vsel %vm58, %v22, -inf
  %84 = vmax.xlane.f32.xlu0 %v83
  %v85 = vpop.xlane.xlu0 %84
  %v86 = vsel %vm58, %v23, -inf
  %87 = vmax.xlane.f32.xlu0 %v86
  %v88 = vpop.xlane.xlu0 %87
  %v89 = vsel %vm58, %v24, -inf
  %90 = vmax.xlane.f32.xlu0 %v89
  %v91 = vpop.xlane.xlu0 %90
  %v92 = vsel %vm58, %v25, -inf
  %93 = vmax.xlane.f32.xlu0 %v92
  %v94 = vpop.xlane.xlu0 %93
  %v95 = vsub.f32 %v20, %v79
  %v96 = vsub.f32 %v21, %v82
  %v97 = vsub.f32 %v22, %v85
  %v98 = vsub.f32 %v23, %v88
  %v99 = vsub.f32 %v24, %v91
  %v100 = vsub.f32 %v25, %v94
  %v101 = vmul.f32 %v95, 1.442695
  %v102 = vpow.pop %v101
  %v103 = vmul.f32 %v96, 1.442695
  %v104 = vpow.pop %v103
  %v105 = vmul.f32 %v97, 1.442695
  %v106 = vpow.pop %v105
  %v107 = vmul.f32 %v98, 1.442695
  %v108 = vpow.pop %v107
  %v109 = vmul.f32 %v99, 1.442695
  %v110 = vpow.pop %v109
  %v111 = vmul.f32 %v100, 1.442695
  %v112 = vpow.pop %v111
  %v113 = vsel %vm58, %v102, 0.0
  %114 = vadd.xlane.f32.xlu0 %v113
  %v115 = vpop.xlane.xlu0 %114
  %v116 = vsel %vm58, %v104, 0.0
  %117 = vadd.xlane.f32.xlu0 %v116
  %v118 = vpop.xlane.xlu0 %117
  %v119 = vsel %vm58, %v106, 0.0
  %120 = vadd.xlane.f32.xlu0 %v119
  %v121 = vpop.xlane.xlu0 %120
  %v122 = vsel %vm58, %v108, 0.0
  %123 = vadd.xlane.f32.xlu0 %v122
  %v124 = vpop.xlane.xlu0 %123
  %v125 = vsel %vm58, %v110, 0.0
  %126 = vadd.xlane.f32.xlu0 %v125
  %v127 = vpop.xlane.xlu0 %126
  %v128 = vsel %vm58, %v112, 0.0
  %129 = vadd.xlane.f32.xlu0 %v128
  %v130 = vpop.xlane.xlu0 %129
  %v131 = vlog2.pop %v115
  %v132 = vmul.f32 %v131, 0.6931472
  %v133 = vlog2.pop %v118
  %v134 = vmul.f32 %v133, 0.6931472
  %v135 = vlog2.pop %v121
  %v136 = vmul.f32 %v135, 0.6931472
  %v137 = vlog2.pop %v124
  %v138 = vmul.f32 %v137, 0.6931472
  %v139 = vlog2.pop %v127
  %v140 = vmul.f32 %v139, 0.6931472
  %v141 = vlog2.pop %v130
  %v142 = vmul.f32 %v141, 0.6931472
  %v143 = vsub.f32 %v61, %v79
  %v144 = vsub.f32 %v64, %v82
  %v145 = vsub.f32 %v67, %v85
  %v146 = vsub.f32 %v70, %v88
  %v147 = vsub.f32 %v73, %v91
  %v148 = vsub.f32 %v76, %v94
  %v149 = vsub.f32 %v143, %v132
  %v150 = vsub.f32 %v144, %v134
  %v151 = vsub.f32 %v145, %v136
  %v152 = vsub.f32 %v146, %v138
  %v153 = vsub.f32 %v147, %v140
  %v154 = vsub.f32 %v148, %v142
  %v155 = vld [vmem:[%s2] sm:$0xff]
  %v156 = vld [vmem:[%s2 + $0x8] sm:$0xff]
  %v157 = vld [vmem:[%s2 + $0x10] sm:$0xff]
  %v158 = vld [vmem:[%s2 + $0x18] sm:$0xff]
  %v159 = vld [vmem:[%s2 + $0x20] sm:$0xff]
  %v160 = vld [vmem:[%s2 + $0x28] sm:$0xff]
  %v161 = vsel %vm46, %v155, 0.0
  %v162 = vsel %vm47, %v156, 0.0
  %v163 = vsel %vm48, %v157, 0.0
  %v164 = vsel %vm49, %v158, 0.0
  %v165 = vsel %vm50, %v159, 0.0
  %v166 = vsel %vm51, %v160, 0.0
  %v167 = vsel %vm58, %v161, 0.0
  %168 = vadd.xlane.f32.xlu0 %v167
  %v169 = vpop.xlane.xlu0 %168
  %v170 = vsel %vm58, %v162, 0.0
  %171 = vadd.xlane.f32.xlu0 %v170
  %v172 = vpop.xlane.xlu0 %171
  %v173 = vsel %vm58, %v163, 0.0
  %174 = vadd.xlane.f32.xlu0 %v173
  %v175 = vpop.xlane.xlu0 %174
  %v176 = vsel %vm58, %v164, 0.0
  %177 = vadd.xlane.f32.xlu0 %v176
  %v178 = vpop.xlane.xlu0 %177
  %v179 = vsel %vm58, %v165, 0.0
  %180 = vadd.xlane.f32.xlu0 %v179
  %v181 = vpop.xlane.xlu0 %180
  %v182 = vsel %vm58, %v166, 0.0
  %183 = vadd.xlane.f32.xlu0 %v182
  %v184 = vpop.xlane.xlu0 %183
  %v185 = vsel %vm58, %v155, -inf
  %186 = vmax.xlane.f32.xlu0 %v185
  %v187 = vpop.xlane.xlu0 %186
  %v188 = vsel %vm58, %v156, -inf
  %189 = vmax.xlane.f32.xlu0 %v188
  %v190 = vpop.xlane.xlu0 %189
  %v191 = vsel %vm58, %v157, -inf
  %192 = vmax.xlane.f32.xlu0 %v191
  %v193 = vpop.xlane.xlu0 %192
  %v194 = vsel %vm58, %v158, -inf
  %195 = vmax.xlane.f32.xlu0 %v194
  %v196 = vpop.xlane.xlu0 %195
  %v197 = vsel %vm58, %v159, -inf
  %198 = vmax.xlane.f32.xlu0 %v197
  %v199 = vpop.xlane.xlu0 %198
  %v200 = vsel %vm58, %v160, -inf
  %201 = vmax.xlane.f32.xlu0 %v200
  %v202 = vpop.xlane.xlu0 %201
  %v203 = vsub.f32 %v155, %v187
  %v204 = vsub.f32 %v156, %v190
  %v205 = vsub.f32 %v157, %v193
  %v206 = vsub.f32 %v158, %v196
  %v207 = vsub.f32 %v159, %v199
  %v208 = vsub.f32 %v160, %v202
  %v209 = vmul.f32 %v203, 1.442695
  %v210 = vpow.pop %v209
  %v211 = vmul.f32 %v204, 1.442695
  %v212 = vpow.pop %v211
  %v213 = vmul.f32 %v205, 1.442695
  %v214 = vpow.pop %v213
  %v215 = vmul.f32 %v206, 1.442695
  %v216 = vpow.pop %v215
  %v217 = vmul.f32 %v207, 1.442695
  %v218 = vpow.pop %v217
  %v219 = vmul.f32 %v208, 1.442695
  %v220 = vpow.pop %v219
  %v221 = vsel %vm58, %v210, 0.0
  %222 = vadd.xlane.f32.xlu0 %v221
  %v223 = vpop.xlane.xlu0 %222
  %v224 = vsel %vm58, %v212, 0.0
  %225 = vadd.xlane.f32.xlu0 %v224
  %v226 = vpop.xlane.xlu0 %225
  %v227 = vsel %vm58, %v214, 0.0
  %228 = vadd.xlane.f32.xlu0 %v227
  %v229 = vpop.xlane.xlu0 %228
  %v230 = vsel %vm58, %v216, 0.0
  %231 = vadd.xlane.f32.xlu0 %v230
  %v232 = vpop.xlane.xlu0 %231
  %v233 = vsel %vm58, %v218, 0.0
  %234 = vadd.xlane.f32.xlu0 %v233
  %v235 = vpop.xlane.xlu0 %234
  %v236 = vsel %vm58, %v220, 0.0
  %237 = vadd.xlane.f32.xlu0 %v236
  %v238 = vpop.xlane.xlu0 %237
  %v239 = vlog2.pop %v223
  %v240 = vmul.f32 %v239, 0.6931472
  %v241 = vlog2.pop %v226
  %v242 = vmul.f32 %v241, 0.6931472
  %v243 = vlog2.pop %v229
  %v244 = vmul.f32 %v243, 0.6931472
  %v245 = vlog2.pop %v232
  %v246 = vmul.f32 %v245, 0.6931472
  %v247 = vlog2.pop %v235
  %v248 = vmul.f32 %v247, 0.6931472
  %v249 = vlog2.pop %v238
  %v250 = vmul.f32 %v249, 0.6931472
  %v251 = vsub.f32 %v169, %v187
  %v252 = vsub.f32 %v172, %v190
  %v253 = vsub.f32 %v175, %v193
  %v254 = vsub.f32 %v178, %v196
  %v255 = vsub.f32 %v181, %v199
  %v256 = vsub.f32 %v184, %v202
  %v257 = vsub.f32 %v251, %v240
  %v258 = vsub.f32 %v252, %v242
  %v259 = vsub.f32 %v253, %v244
  %v260 = vsub.f32 %v254, %v246
  %v261 = vsub.f32 %v255, %v248
  %v262 = vsub.f32 %v256, %v250
  %v263 = vsub.f32 %v257, %v149
  %v264 = vsub.f32 %v258, %v150
  %v265 = vsub.f32 %v259, %v151
  %v266 = vsub.f32 %v260, %v152
  %v267 = vsub.f32 %v261, %v153
  %v268 = vsub.f32 %v262, %v154
  %v269 = vmul.f32 %v263, 1.442695
  %v270 = vpow.pop %v269
  %v271 = vmul.f32 %v264, 1.442695
  %v272 = vpow.pop %v271
  %v273 = vmul.f32 %v265, 1.442695
  %v274 = vpow.pop %v273
  %v275 = vmul.f32 %v266, 1.442695
  %v276 = vpow.pop %v275
  %v277 = vmul.f32 %v267, 1.442695
  %v278 = vpow.pop %v277
  %v279 = vmul.f32 %v268, 1.442695
  %v280 = vpow.pop %v279
  %v281 = vsub.f32 0.0, %v270
  %v282 = vsub.f32 0.0, %v272
  %v283 = vsub.f32 0.0, %v274
  %v284 = vsub.f32 0.0, %v276
  %v285 = vsub.f32 0.0, %v278
  %v286 = vsub.f32 0.0, %v280
  %v287 = vmul.f32 %v281, %v149
  %v288 = vmul.f32 %v282, %v150
  %v289 = vmul.f32 %v283, %v151
  %v290 = vmul.f32 %v284, %v152
  %v291 = vmul.f32 %v285, %v153
  %v292 = vmul.f32 %v286, %v154
  %vm293 = vcmask 7168
  %294 = vst.msk [vmem:[%s3] sm:$0xff] %vm293, %v287
  %295 = vst.msk [vmem:[%s3 + $0x8] sm:$0xff] %vm293, %v288
  %296 = vst.msk [vmem:[%s3 + $0x10] sm:$0xff] %vm293, %v289
  %297 = vst.msk [vmem:[%s3 + $0x18] sm:$0xff] %vm293, %v290
  %298 = vst.msk [vmem:[%s3 + $0x20] sm:$0xff] %vm293, %v291
  %299 = vst.msk [vmem:[%s3 + $0x28] sm:$0xff] %vm293, %v292
  // Predicated region
  $region14: #{tpu_custom_call.1} parent=0 // pred_check
    _
  $region15: #{tpu_custom_call.1} parent=0 // pred_check_branch
    %301 = sbr.rel (0) target = $region17
  $region16: #{tpu_custom_call.1} parent=0 // pred_region
    _
  $region17: #{tpu_custom_call.1} parent=0 // pred_fallthru
    _
  // Predicated region
  $region18: #{tpu_custom_call.1} parent=0 // pred_check
    _
  $region19: #{tpu_custom_call.1} parent=0 // pred_check_branch
    %303 = sbr.rel (0) target = $region21
  $region20: #{tpu_custom_call.1} parent=0 // pred_region
    _
  $region21: #{tpu_custom_call.1} parent=0 // pred_fallthru
    _

</llo_original>
